<compile_context>
chip_gen: v6e
topology: v6e:2x2x1
jax: 0.10.0
libtpu: 0.0.40
codegen_flags: <defaults>
</compile_context>

<pallas_src>
import functools
import math

import jax
import jax.numpy as jnp
import numpy as np
from jax.experimental import pallas as pl
from jax.experimental.pallas import tpu as pltpu

_MiB = 1024 * 1024
_LANE_CANDIDATES = (4096, 2048, 1024, 512, 256, 128)


def _int_pow(x, n: int):
    """x**n for integer n >= 1 via exponentiation-by-squaring (VPU mults only)."""
    result = None
    base = x
    while True:
        if n & 1:
            result = base if result is None else result * base
        n >>= 1
        if n == 0:
            return result
        base = base * base


def _poly_eval_f32(r_f32, r_min, inv_range, p):
    """Evaluate the cutoff polynomial in f32 (Horner form, integer powers)."""
    u = jnp.clip((r_f32 - r_min) * inv_range, 0.0, 1.0)
    c_p = (p + 1.0) * (p + 2.0) / 2.0
    c_p1 = p * (p + 2.0)
    c_p2 = p * (p + 1.0) / 2.0
    if float(p).is_integer() and p >= 1.0:
        u_p = _int_pow(u, int(p))  # no exp/log on the single EUP slot
    else:
        u_p = jnp.power(u, p)      # fallback for non-integral p
    # 1 - c_p*u^p + c_p1*u^(p+1) - c_p2*u^(p+2), Horner on the tail
    return 1.0 - u_p * (c_p - u * (c_p1 - c_p2 * u))


def _poly_cutoff_kernel(r_ref, o_ref, *, r_min, inv_range, p):
    # Upcast to f32 inside the kernel; HBM traffic stays at the input dtype width.
    r = r_ref[...].astype(jnp.float32)
    o_ref[...] = _poly_eval_f32(r, r_min, inv_range, p).astype(o_ref.dtype)


def _vmem_limit_bytes():
    """Explicit VMEM budget, gated by the chip's physical VMEM capacity."""
    try:
        cap = int(getattr(pltpu.get_tpu_info(), "vmem_capacity_bytes", 64 * _MiB))
    except Exception:
        cap = 64 * _MiB  # conservative default (v7x-sized)
    # v5e/v6e (128 MiB) -> 64 MiB; v7x (64 MiB) -> 32 MiB. Never exceed physical.
    return int(min(cap, min(64 * _MiB, max(16 * _MiB, cap // 2))))


def _row_axis_semantics():
    """CORE_PARALLEL on multi-TensorCore chips (v7x), plain parallel elsewhere."""
    try:
        kind = jax.devices()[0].device_kind.lower()
    except Exception:
        kind = ""
    if "v7" in kind:
        return getattr(pltpu, "CORE_PARALLEL", "parallel")
    return "parallel"


def _run_cutoff_2d(x2d, *, r_min, inv_range, p):
    """Run the Pallas kernel on a lane-dense (rows, W) view."""
    rows, W = x2d.shape
    dtype = x2d.dtype
    itemsize = jnp.dtype(dtype).itemsize

    vmem_limit = _vmem_limit_bytes()

    # Sublane quantum depends on dtype packing (f32 -> 8, bf16 -> 16, 8-bit -> 32).
    sub = max(8, 32 // max(1, itemsize))

    # Per-element VMEM budget: double-buffered in+out in the input dtype plus
    # slack for compiler-managed f32 temporaries, kept inside ~75% of the limit.
    per_elem_budget = 4 * itemsize + 8
    max_block_elems = max(sub * 128, int(vmem_limit * 0.75) // per_elem_budget)
    max_block_rows = max(sub, (max_block_elems // W) // sub * sub)

    total_bytes = rows * W * itemsize
    if rows <= max_block_rows:
        if total_bytes > _MiB and rows >= 2 * sub:
            # Never collapse to a single block for >1 MiB inputs: keep >=2 grid
            # steps so multi-TC chips can split the work.
            block_rows = ((rows + 1) // 2 + sub - 1) // sub * sub
        else:
            block_rows = rows  # single full-extent block (always legal)
    else:
        block_rows = max_block_rows  # multiple of `sub`; ragged tail block masked
    grid = pl.cdiv(rows, block_rows)

    kernel = functools.partial(
        _poly_cutoff_kernel, r_min=float(r_min), inv_range=float(inv_range), p=float(p)
    )

    def _call(row_sem):
        return pl.pallas_call(
            kernel,
            out_shape=jax.ShapeDtypeStruct((rows, W), dtype),
            grid_spec=pltpu.PrefetchScalarGridSpec(
                num_scalar_prefetch=0,
                grid=(grid,),
                in_specs=[pl.BlockSpec((block_rows, W), lambda i: (i, 0))],
                out_specs=pl.BlockSpec((block_rows, W), lambda i: (i, 0)),
            ),
            compiler_params=pltpu.CompilerParams(
                dimension_semantics=(row_sem,),
                vmem_limit_bytes=vmem_limit,
            ),
        )(x2d)

    row_sem = _row_axis_semantics()
    if row_sem == "parallel":
        return _call("parallel")
    try:
        return _call(row_sem)
    except Exception:
        # Safe fallback if CORE_PARALLEL is rejected on this chip/JAX build.
        return _call("parallel")


def polynomial_cutoff(r, r_max, r_min=0.0, p=6.0):
    """Apply the DimeNet polynomial cutoff elementwise to a distance tensor `r`."""
    assert r_max >= r_min
    assert p >= 2.0
    assert jnp.issubdtype(r.dtype, jnp.floating), "input distances must be floating point"

    orig_shape = r.shape
    dtype = r.dtype
    n = math.prod(orig_shape)
    if n == 0:
        return r

    rng = float(r_max - r_min)
    # Degenerate range (r_max == r_min): huge finite slope so r < r_min -> 1,
    # r > r_max -> 0, r == r_min -> 1 (polynomial at u=0), without NaN/Inf.
    # (Values within ~1e-30 of r_min get intermediate outputs; negligible.)
    inv_range = (1.0 / rng) if rng > 0.0 else 1e30

    flat = r.reshape(-1)  # keep input dtype; upcast happens inside the kernel

    # Lane-dense 2-D layout: widest lane width that divides n -> no padding pass.
    W = None
    for cand in _LANE_CANDIDATES:
        if n % cand == 0:
            W = cand
            break
    if W is not None:
        out2d = _run_cutoff_2d(flat.reshape(n // W, W),
                               r_min=r_min, inv_range=inv_range, p=p)
        return out2d.reshape(orig_shape)

    # Unaligned fallback: kernel on the 128-aligned prefix, plain XLA on the
    # <128-element remainder. No full-tensor pad/slice passes.
    n_main = (n // 128) * 128
    tail = flat[n_main:]
    tail_out = _poly_eval_f32(tail.astype(jnp.float32),
                              float(r_min), float(inv_range), float(p)).astype(dtype)
    if n_main == 0:
        return tail_out.reshape(orig_shape)
    Wm = 128
    for cand in _LANE_CANDIDATES:
        if n_main % cand == 0:
            Wm = cand
            break
    main_out = _run_cutoff_2d(flat[:n_main].reshape(n_main // Wm, Wm),
                              r_min=r_min, inv_range=inv_range, p=p).reshape(-1)
    return jnp.concatenate([main_out, tail_out]).reshape(orig_shape)


def _numpy_reference(r, r_max, r_min, p):
    r64 = np.asarray(r, dtype=np.float64)
    denom = (r_max - r_min) if (r_max - r_min) > 0 else 1e-30
    u = np.clip((r64 - r_min) / denom, 0.0, 1.0)
    return (1.0
            - (p + 1.0) * (p + 2.0) / 2.0 * u ** p
            + p * (p + 2.0) * u ** (p + 1.0)
            - p * (p + 1.0) / 2.0 * u ** (p + 2.0))


if __name__ == "__main__":
    key = jax.random.PRNGKey(0)
    r_max, r_min, p = 5.0, 0.5, 6.0

    # Main test: lane-aligned distance tensor (2*4*16*16 = 2048 elements).
    r = jax.random.uniform(key, (2, 4, 16, 16), dtype=jnp.float32,
                           minval=0.0, maxval=6.0)
    out = polynomial_cutoff(r, r_max=r_max, r_min=r_min, p=p)
    out = jax.block_until_ready(out)
    ref = _numpy_reference(r, r_max, r_min, p)
    assert out.shape == r.shape and out.dtype == r.dtype
    assert np.allclose(np.asarray(out, dtype=np.float64), ref,
                       atol=5e-5, rtol=1e-5), "mismatch vs reference (aligned path)"

    # Secondary test: unaligned size (7*37 = 259 elements) exercising the
    # prefix-kernel + XLA-tail fallback path.
    r2 = jax.random.uniform(jax.random.PRNGKey(1), (7, 37), dtype=jnp.float32,
                            minval=0.0, maxval=6.0)
    out2 = jax.block_until_ready(polynomial_cutoff(r2, r_max=r_max, r_min=r_min, p=p))
    ref2 = _numpy_reference(r2, r_max, r_min, p)
    assert out2.shape == r2.shape and out2.dtype == r2.dtype
    assert np.allclose(np.asarray(out2, dtype=np.float64), ref2,
                       atol=5e-5, rtol=1e-5), "mismatch vs reference (unaligned path)"

    print("KERNEL_OK")
</pallas_src>

<mosaic_0001>
module attributes {stable_mosaic.version = 11 : i64} {
  func.func @_poly_cutoff_kernel(%arg0: i32, %arg1: memref<1x2048xf32, #tpu.memory_space<vmem>>, %arg2: memref<1x2048xf32, #tpu.memory_space<vmem>>) attributes {dimension_semantics = [#tpu.dimension_semantics<parallel>], iteration_bounds = array<i64: 1>, scalar_prefetch = 0 : i64, scratch_operands = 0 : i64, tpu.core_type = #tpu.core_type<tc>, window_params = [{transform_indices = @transform_0, window_bounds = array<i64: 1, 2048>}, {transform_indices = @transform_1, window_bounds = array<i64: 1, 2048>}]} {
    %c0 = arith.constant 0 : index
    %c0_0 = arith.constant 0 : index
    %0 = vector.load %arg1[%c0, %c0_0] : memref<1x2048xf32, #tpu.memory_space<vmem>>, vector<1x2048xf32>
    %cst = arith.constant 5.000000e-01 : f32
    %1 = vector.broadcast %cst : f32 to vector<1x2048xf32>
    %2 = arith.subf %0, %1 : vector<1x2048xf32>
    %cst_1 = arith.constant 0.222222224 : f32
    %3 = vector.broadcast %cst_1 : f32 to vector<1x2048xf32>
    %4 = arith.mulf %2, %3 : vector<1x2048xf32>
    %cst_2 = arith.constant 0.000000e+00 : f32
    %cst_3 = arith.constant 1.000000e+00 : f32
    %5 = vector.broadcast %cst_2 : f32 to vector<1x2048xf32>
    %6 = arith.maximumf %5, %4 : vector<1x2048xf32>
    %7 = vector.broadcast %cst_3 : f32 to vector<1x2048xf32>
    %8 = arith.minimumf %7, %6 : vector<1x2048xf32>
    %9 = arith.mulf %8, %8 : vector<1x2048xf32>
    %10 = arith.mulf %9, %9 : vector<1x2048xf32>
    %11 = arith.mulf %9, %10 : vector<1x2048xf32>
    %cst_4 = arith.constant 2.100000e+01 : f32
    %12 = vector.broadcast %cst_4 : f32 to vector<1x2048xf32>
    %13 = arith.mulf %12, %8 : vector<1x2048xf32>
    %cst_5 = arith.constant 4.800000e+01 : f32
    %14 = vector.broadcast %cst_5 : f32 to vector<1x2048xf32>
    %15 = arith.subf %14, %13 : vector<1x2048xf32>
    %16 = arith.mulf %8, %15 : vector<1x2048xf32>
    %cst_6 = arith.constant 2.800000e+01 : f32
    %17 = vector.broadcast %cst_6 : f32 to vector<1x2048xf32>
    %18 = arith.subf %17, %16 : vector<1x2048xf32>
    %19 = arith.mulf %11, %18 : vector<1x2048xf32>
    %cst_7 = arith.constant 1.000000e+00 : f32
    %20 = vector.broadcast %cst_7 : f32 to vector<1x2048xf32>
    %21 = arith.subf %20, %19 : vector<1x2048xf32>
    %c0_8 = arith.constant 0 : index
    %c0_9 = arith.constant 0 : index
    %22 = vector.load %arg2[%c0_8, %c0_9] : memref<1x2048xf32, #tpu.memory_space<vmem>>, vector<1x2048xf32>
    tpu.vector_store %arg2[%c0_8, %c0_9], %21 {strides = array<i32>} : memref<1x2048xf32, #tpu.memory_space<vmem>>, vector<1x2048xf32>,
    return
  }
  func.func @transform_0(%arg0: i32) -> (i32, i32) {
    %c0_i32 = arith.constant 0 : i32
    %c0_i32_0 = arith.constant 0 : i32
    return %arg0, %c0_i32 : i32, i32
  }
  func.func @transform_1(%arg0: i32) -> (i32, i32) {
    %c0_i32 = arith.constant 0 : i32
    %c0_i32_0 = arith.constant 0 : i32
    return %arg0, %c0_i32 : i32, i32
  }
}

</mosaic_0001>

<llo_original>
// kernel: tpu_custom_call.1
$region0: #{tpu_custom_call.1}
  #allocation0 [shape = 'u32[]', space=smem, size = 0x4, offset = 0x4, fixed_abs, tag = 'smem constant byte address 0x4 - core index']
  #allocation1 [shape = 'u32[144,128]{1,0:T(1,128)}', space=vmem, size = 0x12000, scoped, tag = 'internal scratch']
  %s0 = inlined_call_operand.hbm [shape: f32[1,2048], index: 0, kind: input, shape index: {}]
  %s1 = inlined_call_operand.hbm [shape: f32[1,2048], index: 1, kind: output, shape index: {}]
  %s2 = sld [smem:[#allocation0]]
  $region18: #{tpu_custom_call.1} parent=0
    _
  %s4 = ssub.s32 1, %s2
  %s5 = scalar_select 0, %s4, %s2
  $region1: #{tpu_custom_call.1} parent=0
    #allocation2 [shape = 'u8[8192]{0}', space=vmem, size = 0x2000, scoped, tag = 'input window, operand 0, single buffered']
    #allocation3 [shape = 's32[1]{0}', space=sflag, size = 0x4, scoped, tag = 'scoped memory for tpu_custom_call.1']
    #allocation4 [shape = 's32[1]{0}', space=sflag, size = 0x4, scoped, tag = 'scoped memory for tpu_custom_call.1']
    #allocation5 [shape = 'u8[8192]{0}', space=vmem, size = 0x2000, scoped, tag = 'output window, operand 0, single buffered']
    %6 = vsyncpa [#allocation3], 0
    %7 = vsyncpa [#allocation4], 0
    // Predicated region
    $region2: #{tpu_custom_call.1} parent=1 // pred_check
      _
    $region3: #{tpu_custom_call.1} parent=1 // pred_check_branch
      %9 = sbr.rel (0) target = $region5
    $region4: #{tpu_custom_call.1} parent=1 // pred_region
      %s11 = ssub.s32 256, 256
      %12 = vsyncadd [#allocation3], %s11
      %s14 = sshll.u32 [#allocation2], 4
      %s15 = int_to_ptr.vmem [resolvable:$true] %s14
      %17 = dma.hbm_to_vmem [thread:$0]  %s0, 256, %s15, [#allocation3]
    $region5: #{tpu_custom_call.1} parent=1 // pred_fallthru
      _
    // Predicated region
    $region6: #{tpu_custom_call.1} parent=1 // pred_check
      _
    $region7: #{tpu_custom_call.1} parent=1 // pred_check_branch
      %19 = sbr.rel (0) target = $region9
    $region8: #{tpu_custom_call.1} parent=1 // pred_region
      %20 = dma.done [#allocation3], 256
    $region9: #{tpu_custom_call.1} parent=1 // pred_fallthru
      _
    %v21 = vld [vmem:[#allocation2] sm:$0xff]
    %v22 = vld [vmem:[#allocation2 + $0x8] sm:$0xff]
    %v23 = vsub.f32 %v21, 0.5
    %v24 = vsub.f32 %v22, 0.5
    %v25 = vmul.f32 %v23, 0.22222222
    %v26 = vmul.f32 %v24, 0.22222222
    %v27 = vmax.f32 %v25, 0.0
    %v28 = vmax.f32 %v26, 0.0
    %v29 = vmin.f32 %v27, 1.0
    %v30 = vmin.f32 %v28, 1.0
    %v31 = vmul.f32 %v29, %v29
    %v32 = vmul.f32 %v30, %v30
    %v33 = vmul.f32 %v31, %v31
    %v34 = vmul.f32 %v32, %v32
    %v35 = vmul.f32 %v31, %v33
    %v36 = vmul.f32 %v32, %v34
    %v37 = vmul.f32 %v29, 21.0
    %v38 = vmul.f32 %v30, 21.0
    %v39 = vsub.f32 48.0, %v37
    %v40 = vsub.f32 48.0, %v38
    %v41 = vmul.f32 %v29, %v39
    %v42 = vmul.f32 %v30, %v40
    %v43 = vsub.f32 28.0, %v41
    %v44 = vsub.f32 28.0, %v42
    %v45 = vmul.f32 %v35, %v43
    %v46 = vmul.f32 %v36, %v44
    %v47 = vsub.f32 1.0, %v45
    %v48 = vsub.f32 1.0, %v46
    %49 = vst [vmem:[#allocation5] sm:$0xff] %v47
    %50 = vst [vmem:[#allocation5 + $0x8] sm:$0xff] %v48
    // Predicated region
    $region10: #{tpu_custom_call.1} parent=1 // pred_check
      _
    $region11: #{tpu_custom_call.1} parent=1 // pred_check_branch
      %52 = sbr.rel (0) target = $region13
    $region12: #{tpu_custom_call.1} parent=1 // pred_region
      %s54 = ssub.s32 256, 256
      %55 = vsyncadd [#allocation4], %s54
      %s57 = sshll.u32 [#allocation5], 4
      %s58 = int_to_ptr.vmem [resolvable:$true] %s57
      %60 = dma.vmem_to_hbm [thread:$0]  %s58, 256, %s1, [#allocation4]
    $region13: #{tpu_custom_call.1} parent=1 // pred_fallthru
      _
    // Predicated region
    $region14: #{tpu_custom_call.1} parent=1 // pred_check
      _
    $region15: #{tpu_custom_call.1} parent=1 // pred_check_branch
      %62 = sbr.rel (0) target = $region17
    $region16: #{tpu_custom_call.1} parent=1 // pred_region
      %63 = dma.done [#allocation4], 256
    $region17: #{tpu_custom_call.1} parent=1 // pred_fallthru
      _
    %64 = vsyncpa [#allocation3], 1
    %65 = vsyncpa [#allocation4], 1

</llo_original>
